<compile_context>
chip_gen: v5e
topology: v5e:2x2
jax: 0.10.0
libtpu: 0.0.40
codegen_flags: <defaults>
</compile_context>

<pallas_src>
from functools import partial

import jax
import jax.numpy as jnp
from jax.experimental import pallas as pl
from jax.experimental.pallas import tpu as pltpu

LANE = 128
# (4096, 128) f32 tile = 2 MiB/buffer. Pass-2 double-buffered in+out = 8 MiB,
# comfortably under the explicit 32 MiB scoped-VMEM limit on all generations
# (v5e/v6e 128 MiB physical, v7x 64 MiB).  v6e could bump to 8192 rows /
# 48 MiB for another ~1-3%, but 4096 is safe everywhere.
MAX_BLOCK_ROWS = 4096
# Slabs up to this many rows (2 MiB f32 footprint) take the fully fused
# single-kernel path (whole slab resident in VMEM).
FUSED_MAX_ROWS = 4096
VMEM_LIMIT_BYTES = 32 << 20
NUM_CORES = 2  # leading 'parallel' axis of the stats pass (v7x megacore)


# --------------------------------------------------------------------------
# Shared in-kernel helpers
# --------------------------------------------------------------------------
def _finalize(xmin, asum, n_true, nbits):
    """(1,1) min(x) and (1,1) sum|x|  ->  (alpha, 1/alpha, Qn, Qp), (1,1) f32."""
    signed = xmin < -1e-5
    qn = jnp.where(signed, -(2.0 ** (nbits - 1)), 0.0)
    qp = jnp.where(signed, 2.0 ** (nbits - 1) - 1.0, 2.0 ** nbits - 1.0)
    abs_mean = asum / jnp.float32(n_true)          # divide by TRUE element count
    alpha = 2.0 * abs_mean / jnp.sqrt(qp)
    # One scalar reciprocal instead of a per-element f32 divide: the divide's
    # EUP+Newton chain would make the quant pass compute-bound on v7x.
    # NOTE: alpha == 0 (all-zero input) yields NaN, same as the torch/JAX ref.
    inv_alpha = 1.0 / alpha
    return alpha, inv_alpha, qn, qp


def _quantize(x_f32, alpha, inv_alpha, qn, qp):
    # jnp.round == round-half-to-even == torch.round
    return jnp.round(jnp.clip(x_f32 * inv_alpha, qn, qp)) * alpha


# --------------------------------------------------------------------------
# Fused path: whole slab resident in VMEM -> 1 HBM read + 1 HBM write.
# --------------------------------------------------------------------------
def _make_fused_kernel(n_true, nbits):
    def kernel(x_ref, o_ref):
        x = x_ref[...].astype(jnp.float32)
        # Lane padding is zeros: it can never flip `signed` (0 > -1e-5) and it
        # contributes 0 to sum|x|; abs-mean divides by the true element count.
        xmin = jnp.min(jnp.min(x, axis=0, keepdims=True), axis=1, keepdims=True)
        asum = jnp.sum(jnp.sum(jnp.abs(x), axis=0, keepdims=True),
                       axis=1, keepdims=True)
        alpha, inv_alpha, qn, qp = _finalize(xmin, asum, n_true, nbits)
        o_ref[...] = _quantize(x, alpha, inv_alpha, qn, qp).astype(o_ref.dtype)

    return kernel


# --------------------------------------------------------------------------
# 2-pass path, pass 1: fused min / abs-sum reduction (single HBM read).
# Output: (2, NUM_CORES*LANE) f32 — row 0 = per-lane mins, row 1 = per-lane
# |x| sums, one LANE-wide column block per core.
# --------------------------------------------------------------------------
def _make_stats_kernel(block_r, total_rows, nb, nbh):
    has_tail = (total_rows % block_r) != 0

    def kernel(x_ref, part_ref):
        c = pl.program_id(0)          # megacore shard (v7x); sequential elsewhere
        i = pl.program_id(1)          # row-block within this core's range
        blk = c * nbh + i             # global row-block index (may be a clamped dup)
        is_valid = blk < nb

        @pl.when(i == 0)
        def _init():
            # Identity elements: a core whose blocks are all clamped
            # duplicates leaves a harmless [inf, 0] column.
            part_ref[0:1, :] = jnp.full((1, LANE), jnp.inf, jnp.float32)
            part_ref[1:2, :] = jnp.zeros((1, LANE), jnp.float32)

        x = x_ref[...].astype(jnp.float32)

        def _accumulate(pmin, psum):
            part_ref[0:1, :] = jnp.minimum(part_ref[0:1, :], pmin)
            part_ref[1:2, :] = part_ref[1:2, :] + psum

        if has_tail:
            is_tail = blk == nb - 1

            @pl.when(is_valid & jnp.logical_not(is_tail))
            def _full_block():
                _accumulate(jnp.min(x, axis=0, keepdims=True),
                            jnp.sum(jnp.abs(x), axis=0, keepdims=True))

            # iota + compare + 2x select paid only on the single tail block
            # (keeps the stats pass DMA-bound on v7x).
            @pl.when(is_valid & is_tail)
            def _tail_block():
                row = blk * block_r + jax.lax.broadcasted_iota(
                    jnp.int32, x.shape, 0)
                keep = row < total_rows
                _accumulate(
                    jnp.min(jnp.where(keep, x, jnp.inf), axis=0, keepdims=True),
                    jnp.sum(jnp.where(keep, jnp.abs(x), 0.0), axis=0,
                            keepdims=True))
        else:
            @pl.when(is_valid)
            def _full_block():
                _accumulate(jnp.min(x, axis=0, keepdims=True),
                            jnp.sum(jnp.abs(x), axis=0, keepdims=True))

    return kernel


# --------------------------------------------------------------------------
# 2-pass path, pass 2: elementwise fake-quant. The stats finalize is redone
# per block from the tiny partials array (two 256-lane reduces + a few scalar
# ops — XLU/EUP slots, hidden under the 2 MiB block DMA), so there is NO XLA
# glue between the two pallas_calls.
# --------------------------------------------------------------------------
def _make_quant_kernel(n_true, nbits):
    def kernel(stats_ref, x_ref, o_ref):
        st = stats_ref[...]                                  # (2, NUM_CORES*LANE)
        xmin = jnp.min(st[0:1, :], axis=1, keepdims=True)    # (1, 1)
        asum = jnp.sum(st[1:2, :], axis=1, keepdims=True)    # (1, 1)
        alpha, inv_alpha, qn, qp = _finalize(xmin, asum, n_true, nbits)
        x = x_ref[...].astype(jnp.float32)
        o_ref[...] = _quantize(x, alpha, inv_alpha, qn, qp).astype(o_ref.dtype)

    return kernel


def _as_lane_slab(x):
    """Flatten to a lane-dense (rows, 128) slab; pad only if required."""
    n = x.size
    xf = x.reshape(-1)
    pad = (-n) % LANE
    if pad:  # static (shape-level) branch; zero padding cannot flip `signed`
        xf = jnp.pad(xf, (0, pad))
    return xf.reshape(-1, LANE), n


@partial(jax.jit, static_argnames=("nbits_a",))
def act_ours_forward(x, nbits_a=4):
    """Pallas implementation of ActOurs.forward (training first-call / eval)."""
    orig_shape = x.shape
    orig_dtype = x.dtype

    x2d, n = _as_lane_slab(x)            # native dtype, no f32 HBM copy
    rows = x2d.shape[0]

    if rows <= FUSED_MAX_ROWS:
        # ---- fully fused: 1 read + 1 write, one launch, no glue ----
        out2d = pl.pallas_call(
            _make_fused_kernel(n, nbits_a),
            out_shape=jax.ShapeDtypeStruct((rows, LANE), orig_dtype),
            grid=(1,),
            in_specs=[pl.BlockSpec((rows, LANE), lambda i: (0, 0))],
            out_specs=pl.BlockSpec((rows, LANE), lambda i: (0, 0)),
            compiler_params=pltpu.CompilerParams(
                dimension_semantics=("arbitrary",),
                vmem_limit_bytes=VMEM_LIMIT_BYTES),
        )(x2d)
    else:
        block_r = MAX_BLOCK_ROWS
        nb = pl.cdiv(rows, block_r)          # >= 2 on this path
        nbh = pl.cdiv(nb, NUM_CORES)         # row-blocks per core

        # ---- pass 1: min / abs-sum partials, sharded over 2 cores ----
        partials = pl.pallas_call(
            _make_stats_kernel(block_r, rows, nb, nbh),
            out_shape=jax.ShapeDtypeStruct((2, NUM_CORES * LANE), jnp.float32),
            grid=(NUM_CORES, nbh),
            in_specs=[pl.BlockSpec(
                (block_r, LANE),
                # Clamp keeps duplicate trailing steps in-bounds; the kernel
                # skips their accumulation via the `blk < nb` guard.
                lambda c, i: (jnp.minimum(c * nbh + i, nb - 1), 0))],
            out_specs=pl.BlockSpec((2, LANE), lambda c, i: (0, c)),
            compiler_params=pltpu.CompilerParams(
                dimension_semantics=("parallel", "arbitrary"),
                vmem_limit_bytes=VMEM_LIMIT_BYTES),
        )(x2d)

        # ---- pass 2: elementwise fake-quant (>= 2 blocks, 'parallel') ----
        out2d = pl.pallas_call(
            _make_quant_kernel(n, nbits_a),
            out_shape=jax.ShapeDtypeStruct((rows, LANE), orig_dtype),
            grid=(nb,),
            in_specs=[
                pl.BlockSpec((2, NUM_CORES * LANE), lambda i: (0, 0)),  # stats
                pl.BlockSpec((block_r, LANE), lambda i: (i, 0)),        # x tile
            ],
            out_specs=pl.BlockSpec((block_r, LANE), lambda i: (i, 0)),
            compiler_params=pltpu.CompilerParams(
                dimension_semantics=("parallel",),
                vmem_limit_bytes=VMEM_LIMIT_BYTES),
        )(partials, x2d)

    out = out2d.reshape(-1)
    if out.shape[0] != n:   # static branch; only when lane padding was applied
        out = out[:n]
    return out.reshape(orig_shape)


def act_ours_reference(x, nbits_a=4):
    """Pure-JAX reference mirroring the PyTorch forward; also returns alpha."""
    xf = x.astype(jnp.float32)
    signed = xf.min() < -1e-5
    qn = jnp.where(signed, -(2.0 ** (nbits_a - 1)), 0.0)
    qp = jnp.where(signed, 2.0 ** (nbits_a - 1) - 1.0, 2.0 ** nbits_a - 1.0)
    alpha = 2.0 * jnp.abs(xf).mean() / jnp.sqrt(qp)
    out = (jnp.round(jnp.clip(xf / alpha, qn, qp)) * alpha).astype(x.dtype)
    return out, alpha


def _check(name, out, ref, alpha):
    # The kernel reduces sum|x| in a different order than XLA's mean() and
    # multiplies by a precomputed 1/alpha instead of dividing — both ulp-level
    # effects.  An element whose x/alpha sits within float-rounding distance
    # of a .5 boundary may therefore land exactly one quantization step away.
    # Everything else must agree to float precision, and such boundary ties
    # must be vanishingly rare.
    diff = jnp.abs(out.astype(jnp.float32) - ref.astype(jnp.float32))
    max_diff = float(jnp.max(diff))
    n_flip = int(jnp.sum(diff > 1e-4))
    assert max_diff <= float(alpha) * 1.001 + 1e-4, (name, max_diff)
    assert n_flip <= max(2, out.size // 100000), (name, n_flip)


# TODO(synk): grad_scale / round_pass are straight-through gradient tricks
# (backward-only); only the forward pass is implemented here.

if __name__ == "__main__":
    key = jax.random.PRNGKey(0)
    k1, k2 = jax.random.split(key)

    # Small NCHW activation map -> fully fused single-kernel path.
    x_small = jax.random.normal(k1, (2, 4, 16, 16), dtype=jnp.float32)
    out_small = jax.block_until_ready(act_ours_forward(x_small, nbits_a=4))
    ref_small, alpha_small = act_ours_reference(x_small, nbits_a=4)
    assert out_small.shape == x_small.shape and out_small.dtype == x_small.dtype
    _check("fused", out_small, ref_small, alpha_small)

    # Minimal size that exercises the tiled 2-pass (stats + quant) path
    # (rows > 4096), including the tail-masked last block.
    x_big = jax.random.normal(k2, (2, 12, 160, 160), dtype=jnp.float32)
    out_big = jax.block_until_ready(act_ours_forward(x_big, nbits_a=4))
    ref_big, alpha_big = act_ours_reference(x_big, nbits_a=4)
    assert out_big.shape == x_big.shape and out_big.dtype == x_big.dtype
    _check("two_pass", out_big, ref_big, alpha_big)

    print("KERNEL_OK")
</pallas_src>

<mosaic_0001>
module attributes {stable_mosaic.version = 11 : i64} {
  func.func @kernel(%arg0: i32, %arg1: memref<16x128xf32, #tpu.memory_space<vmem>>, %arg2: memref<16x128xf32, #tpu.memory_space<vmem>>) attributes {dimension_semantics = [#tpu.dimension_semantics<arbitrary>], iteration_bounds = array<i64: 1>, scalar_prefetch = 0 : i64, scratch_operands = 0 : i64, tpu.core_type = #tpu.core_type<tc>, window_params = [{pipeline_mode = #tpu.pipeline_mode<synchronous>, transform_indices = @transform_0, window_bounds = array<i64: 16, 128>}, {pipeline_mode = #tpu.pipeline_mode<synchronous>, transform_indices = @transform_1, window_bounds = array<i64: 16, 128>}]} {
    %c0 = arith.constant 0 : index
    %c0_0 = arith.constant 0 : index
    %0 = vector.load %arg1[%c0, %c0_0] : memref<16x128xf32, #tpu.memory_space<vmem>>, vector<16x128xf32>
    %cst = arith.constant dense<0x7F800000> : vector<128xf32>
    %1 = vector.multi_reduction <minimumf>, %0, %cst [0] : vector<16x128xf32> to vector<128xf32>
    %2 = vector.shape_cast %1 : vector<128xf32> to vector<1x128xf32>
    %cst_1 = arith.constant dense<0x7F800000> : vector<1xf32>
    %3 = vector.multi_reduction <minimumf>, %2, %cst_1 [1] : vector<1x128xf32> to vector<1xf32>
    %4 = vector.shape_cast %3 : vector<1xf32> to vector<1x1xf32>
    %5 = math.absf %0 : vector<16x128xf32>
    %cst_2 = arith.constant dense<0.000000e+00> : vector<128xf32>
    %6 = vector.multi_reduction <add>, %5, %cst_2 [0] : vector<16x128xf32> to vector<128xf32>
    %7 = vector.shape_cast %6 : vector<128xf32> to vector<1x128xf32>
    %cst_3 = arith.constant dense<0.000000e+00> : vector<1xf32>
    %8 = vector.multi_reduction <add>, %7, %cst_3 [1] : vector<1x128xf32> to vector<1xf32>
    %9 = vector.shape_cast %8 : vector<1xf32> to vector<1x1xf32>
    %cst_4 = arith.constant -9.99999974E-6 : f32
    %10 = vector.broadcast %cst_4 : f32 to vector<1x1xf32>
    %11 = arith.cmpf olt, %4, %10 : vector<1x1xf32>
    %cst_5 = arith.constant -8.000000e+00 : f32
    %cst_6 = arith.constant 0.000000e+00 : f32
    %12 = vector.broadcast %cst_5 : f32 to vector<1x1xf32>
    %13 = vector.broadcast %cst_6 : f32 to vector<1x1xf32>
    %14 = arith.select %11, %12, %13 : vector<1x1xi1>, vector<1x1xf32>
    %cst_7 = arith.constant 7.000000e+00 : f32
    %cst_8 = arith.constant 1.500000e+01 : f32
    %15 = vector.broadcast %cst_7 : f32 to vector<1x1xf32>
    %16 = vector.broadcast %cst_8 : f32 to vector<1x1xf32>
    %17 = arith.select %11, %15, %16 : vector<1x1xi1>, vector<1x1xf32>
    %cst_9 = arith.constant 2.048000e+03 : f32
    %18 = vector.broadcast %cst_9 : f32 to vector<1x1xf32>
    %19 = arith.divf %9, %18 : vector<1x1xf32>
    %cst_10 = arith.constant 2.000000e+00 : f32
    %20 = vector.broadcast %cst_10 : f32 to vector<1x1xf32>
    %21 = arith.mulf %20, %19 : vector<1x1xf32>
    %22 = math.sqrt %17 : vector<1x1xf32>
    %23 = arith.divf %21, %22 : vector<1x1xf32>
    %cst_11 = arith.constant 1.000000e+00 : f32
    %24 = vector.broadcast %cst_11 : f32 to vector<1x1xf32>
    %25 = arith.divf %24, %23 : vector<1x1xf32>
    %26 = vector.broadcast %25 : vector<1x1xf32> to vector<16x128xf32>
    %27 = arith.mulf %0, %26 : vector<16x128xf32>
    %28 = vector.broadcast %14 : vector<1x1xf32> to vector<16x128xf32>
    %29 = arith.maximumf %28, %27 : vector<16x128xf32>
    %30 = vector.broadcast %17 : vector<1x1xf32> to vector<16x128xf32>
    %31 = arith.minimumf %30, %29 : vector<16x128xf32>
    %32 = math.roundeven %31 : vector<16x128xf32>
    %33 = vector.broadcast %23 : vector<1x1xf32> to vector<16x128xf32>
    %34 = arith.mulf %32, %33 : vector<16x128xf32>
    %c0_12 = arith.constant 0 : index
    %c0_13 = arith.constant 0 : index
    %35 = vector.load %arg2[%c0_12, %c0_13] : memref<16x128xf32, #tpu.memory_space<vmem>>, vector<16x128xf32>
    tpu.vector_store %arg2[%c0_12, %c0_13], %34 {strides = array<i32>} : memref<16x128xf32, #tpu.memory_space<vmem>>, vector<16x128xf32>,
    return
  }
  func.func @transform_0(%arg0: i32) -> (i32, i32) {
    %c0_i32 = arith.constant 0 : i32
    %c0_i32_0 = arith.constant 0 : i32
    %c0_i32_1 = arith.constant 0 : i32
    return %c0_i32, %c0_i32_0 : i32, i32
  }
  func.func @transform_1(%arg0: i32) -> (i32, i32) {
    %c0_i32 = arith.constant 0 : i32
    %c0_i32_0 = arith.constant 0 : i32
    %c0_i32_1 = arith.constant 0 : i32
    return %c0_i32, %c0_i32_0 : i32, i32
  }
}

</mosaic_0001>

<llo_original>
// kernel: act_ours_forward.1
$region0: #{act_ours_forward.1}
  #allocation0 [shape = 'u32[]', space=smem, size = 0x4, offset = 0x4, fixed_abs, tag = 'smem constant byte address 0x4 - core index']
  #allocation1 [shape = 'u32[72,128]{1,0:T(1,128)}', space=vmem, size = 0x9000, scoped, tag = 'internal scratch']
  %s0 = inlined_call_operand.vmem [shape: f32[16,128], index: 0, kind: input, shape index: {}]
  %s1 = inlined_call_operand.vmem [shape: f32[16,128], index: 1, kind: output, shape index: {}]
  %s2 = sld [smem:[#allocation0]]
  $region14: #{act_ours_forward.1} parent=0
    _
  %s4 = ssub.s32 1, %s2
  %s5 = scalar_select 0, %s4, %s2
  // Predicated region
  $region2: #{act_ours_forward.1} parent=0 // pred_check
    _
  $region3: #{act_ours_forward.1} parent=0 // pred_check_branch
    %7 = sbr.rel (0) target = $region5
  $region4: #{act_ours_forward.1} parent=0 // pred_region
    _
  $region5: #{act_ours_forward.1} parent=0 // pred_fallthru
    _
  %v8 = vld [vmem:[%s0] sm:$0xff]
  %v9 = vld [vmem:[%s0 + $0x8] sm:$0xff]
  %v10 = vmin.f32 %v8, %v9
  %v11 = vrot.slane %v10, 4
  %v12 = vmin.f32 %v10, %v11
  %v13 = vrot.slane %v12, 2
  %v14 = vmin.f32 %v12, %v13
  %v15 = vrot.slane %v14, 1
  %v16 = vmin.f32 %v14, %v15
  %17 = vmin.xlane.f32.xlu0 %v16
  %v18 = vpop.xlane.xlu0 %17
  %v19 = vand.u32 2147483647, %v8
  %v20 = vand.u32 2147483647, %v9
  %v21 = vadd.f32 %v19, %v20
  %v22 = vrot.slane %v21, 4
  %v23 = vadd.f32 %v21, %v22
  %v24 = vrot.slane %v23, 2
  %v25 = vadd.f32 %v23, %v24
  %v26 = vrot.slane %v25, 1
  %v27 = vadd.f32 %v25, %v26
  %28 = vadd.xlane.f32.xlu0 %v27
  %v29 = vpop.xlane.xlu0 %28
  %vm30 = vcmp.lt.f32.partialorder %v18, -1e-05
  %v31 = vsel %vm30, -8.0, 0.0
  %v32 = vsel %vm30, 7.0, 15.0
  %v33 = vrcp.pop 2048.0
  %v34 = vmul.f32 2048.0, %v33
  %v35 = vsub.f32 1.0, %v34
  %v36 = vmul.f32 %v33, %v35
  %v37 = vadd.f32 %v33, %v36
  %vm38 = vweird.f32 %v33
  %v39 = vsel %vm38, %v33, %v37
  %v40 = vmul.f32 %v29, %v39
  %v41 = vmul.f32 %v40, 2.0
  %v42 = vrsqrt.pop %v32
  %v43 = vmul.f32 %v42, %v32
  %v44 = vmul.f32 %v43, %v42
  %v45 = vmul.f32 0.5, %v44
  %v46 = vsub.f32 1.5, %v45
  %v47 = vmul.f32 %v42, %v46
  %v48 = vmul.f32 %v32, %v47
  %vm49 = vcmp.eq.f32.partialorder %v32, inf
  %v50 = vsel %vm49, %v32, %v48
  %vm51 = vcmp.eq.f32.partialorder %v32, 0.0
  %v52 = vand.u32 %v32, 2147483648
  %v53 = vsel %vm51, %v52, %v50
  %v54 = vrcp.pop %v53
  %v55 = vmul.f32 %v53, %v54
  %v56 = vsub.f32 1.0, %v55
  %v57 = vmul.f32 %v54, %v56
  %v58 = vadd.f32 %v54, %v57
  %vm59 = vweird.f32 %v53
  %vm60 = vweird.f32 %v54
  %vm61 = vmor %vm59, %vm60
  %v62 = vsel %vm61, %v54, %v58
  %v63 = vand.u32 2147483647, %v53
  %vm64 = vcmp.eq.f32.partialorder %v63, 8.507059e+37
  %v65 = vand.u32 %v53, 2147483648
  %v66 = vor.u32 1.1754944e-38, %v65
  %v67 = vsel %vm64, %v66, %v62
  %v68 = vmul.f32 %v41, %v67
  %v69 = vrcp.pop %v68
  %v70 = vmul.f32 %v68, %v69
  %v71 = vsub.f32 1.0, %v70
  %v72 = vmul.f32 %v69, %v71
  %v73 = vadd.f32 %v69, %v72
  %vm74 = vweird.f32 %v68
  %vm75 = vweird.f32 %v69
  %vm76 = vmor %vm74, %vm75
  %v77 = vsel %vm76, %v69, %v73
  %v78 = vand.u32 2147483647, %v68
  %vm79 = vcmp.eq.f32.partialorder %v78, 8.507059e+37
  %v80 = vand.u32 %v68, 2147483648
  %v81 = vor.u32 1.1754944e-38, %v80
  %v82 = vsel %vm79, %v81, %v77
  %v83 = vmul.f32 1.0, %v82
  %v84 = vmul.f32 %v8, %v83
  %v85 = vmul.f32 %v9, %v83
  %v86 = vmax.f32 %v31, %v84
  %v87 = vmax.f32 %v31, %v85
  %v88 = vmin.f32 %v32, %v86
  %v89 = vmin.f32 %v32, %v87
  %v90 = vround.ne.pseudo %v88
  %v91 = vround.ne.pseudo %v89
  %v92 = vmul.f32 %v90, %v68
  %v93 = vmul.f32 %v91, %v68
  %94 = vst [vmem:[%s1] sm:$0xff] %v92
  %95 = vst [vmem:[%s1 + $0x8] sm:$0xff] %v93
  // Predicated region
  $region6: #{act_ours_forward.1} parent=0 // pred_check
    _
  $region7: #{act_ours_forward.1} parent=0 // pred_check_branch
    %97 = sbr.rel (0) target = $region9
  $region8: #{act_ours_forward.1} parent=0 // pred_region
    _
  $region9: #{act_ours_forward.1} parent=0 // pred_fallthru
    _
  // Predicated region
  $region10: #{act_ours_forward.1} parent=0 // pred_check
    _
  $region11: #{act_ours_forward.1} parent=0 // pred_check_branch
    %99 = sbr.rel (0) target = $region13
  $region12: #{act_ours_forward.1} parent=0 // pred_region
    _
  $region13: #{act_ours_forward.1} parent=0 // pred_fallthru
    _

</llo_original>
